<compile_context>
chip_gen: v5e
topology: v5e:2x2
jax: 0.10.0
libtpu: 0.0.40
codegen_flags: <defaults>
</compile_context>

<pallas_src>
import functools

import jax
import jax.numpy as jnp
from jax.experimental import pallas as pl
from jax.experimental.pallas import tpu as pltpu


def _quantize_kernel(x_ref, w_ref, wt_ref, nhw2_ref, q_ref, idx_ref):
    """One (batch, pixel-tile) step of nearest-codebook lookup.

    x_ref   : (1, C, T)  channels-major input pixels (NCHW slab)
    w_ref   : (K, C)     codebook
    wt_ref  : (C, K)     codebook transposed (precomputed in wrapper)
    nhw2_ref: (K, 1)     -0.5 * ||w_k||^2   (precomputed, f32)
    q_ref   : (1, C, T)  quantized pixels (NCHW slab) -> lane-dense store
    idx_ref : (1, 1, T)  int32 encoding indices       -> lane-dense store
    """
    x_t = x_ref[0]                                   # (C, T)
    w = w_ref[...]                                   # (K, C)
    k = w.shape[0]
    t = x_t.shape[1]

    # score[k, r] = w_k . x_r - 0.5*||w_k||^2 ;  argmax_k == argmin_k ||x_r - w_k||^2
    score = jnp.dot(w, x_t, preferred_element_type=jnp.float32) + nhw2_ref[...]  # (K, T)

    # first-index argmax over the (sublane) codebook axis -> matches torch.max tie-break
    row = jax.lax.broadcasted_iota(jnp.int32, (k, t), 0)                 # (K, T)
    best = jnp.max(score, axis=0, keepdims=True)                         # (1, T)
    idx = jnp.min(jnp.where(score == best, row, k), axis=0, keepdims=True)  # (1, T)
    idx_ref[0] = idx

    # gather codebook rows via one-hot matmul (exact row copy, MXU-friendly);
    # pixel axis stays on lanes so the q writeback is unmasked.
    onehot = (row == idx).astype(wt_ref.dtype)                           # (K, T)
    q_t = jnp.dot(wt_ref[...], onehot, preferred_element_type=jnp.float32)  # (C, T)
    q_ref[0] = q_t.astype(q_ref.dtype)


def _pick_tile(hw_pad, tn_max):
    """Largest multiple of 128 that divides hw_pad and is <= tn_max."""
    tn = 128
    t = 256
    while t <= min(hw_pad, tn_max):
        if hw_pad % t == 0:
            tn = t
        t += 128
    return tn


@functools.partial(jax.jit, static_argnames=("tn_max",))
def quantize_forward(z, weight, *, tn_max=2048):
    """z: (b, c, h, w) NCHW, weight: (size, code_dim).
    Returns (quantized NCHW, straight-through NCHW, encoding_indices (b, h, w))."""
    b, c, h, w = z.shape
    size, code_dim = weight.shape
    assert c == code_dim

    hw = h * w
    hw_pad = ((hw + 127) // 128) * 128           # pad spatial axis to a lane multiple
    tn = _pick_tile(hw_pad, tn_max)

    z_r = z.reshape(b, c, hw)                    # free metadata reshape (NCHW slab)
    if hw_pad != hw:
        z_r = jnp.pad(z_r, ((0, 0), (0, 0), (0, hw_pad - hw)))

    # codebook-derived constants, computed once (tiny) and kept resident
    w32 = weight.astype(jnp.float32)
    neg_half_w2 = -0.5 * jnp.sum(w32 * w32, axis=1, keepdims=True)       # (K, 1) f32
    wt = jnp.transpose(weight)                                           # (C, K)

    grid = (b, hw_pad // tn)
    q_r, idx_r = pl.pallas_call(
        _quantize_kernel,
        out_shape=(
            jax.ShapeDtypeStruct((b, c, hw_pad), z.dtype),
            jax.ShapeDtypeStruct((b, 1, hw_pad), jnp.int32),
        ),
        grid_spec=pltpu.PrefetchScalarGridSpec(
            num_scalar_prefetch=0,
            grid=grid,
            in_specs=[
                pl.BlockSpec((1, c, tn), lambda bi, ji: (bi, 0, ji)),       # pixels
                pl.BlockSpec((size, code_dim), lambda bi, ji: (0, 0)),      # W
                pl.BlockSpec((code_dim, size), lambda bi, ji: (0, 0)),      # W^T
                pl.BlockSpec((size, 1), lambda bi, ji: (0, 0)),             # -0.5||W||^2
            ],
            out_specs=(
                pl.BlockSpec((1, c, tn), lambda bi, ji: (bi, 0, ji)),
                pl.BlockSpec((1, 1, tn), lambda bi, ji: (bi, 0, ji)),
            ),
        ),
        compiler_params=pltpu.CompilerParams(
            dimension_semantics=("parallel", "parallel")),
    )(z_r, weight, wt, neg_half_w2)

    quantized = q_r[:, :, :hw].reshape(b, c, h, w)              # already NCHW
    encoding_indices = idx_r[:, 0, :hw].reshape(b, h, w)
    # straight-through estimator: value == quantized, gradient flows to z only
    straight_through = jax.lax.stop_gradient(quantized - z) + z
    # TODO(synk): pallas_call has no VJP — training losses that differentiate
    # through `quantized` (codebook/commitment terms) need a custom_vjp wrapper.
    return quantized, straight_through, encoding_indices


if __name__ == "__main__":
    # Module hyper-params (synthetic, deterministic init — no checkpoint)
    size = 16          # codebook entries
    code_dim = 32      # embedding / channel dim
    b, h, w = 2, 16, 16

    key = jax.random.PRNGKey(0)
    kz, kw = jax.random.split(key)
    # embedding.weight.data.uniform_(-1/size, 1/size)
    weight = jax.random.uniform(kw, (size, code_dim), jnp.float32,
                                minval=-1.0 / size, maxval=1.0 / size)
    z = jax.random.normal(kz, (b, code_dim, h, w), jnp.float32)

    quantized, ste, indices = quantize_forward(z, weight)
    jax.block_until_ready((quantized, ste, indices))

    # ---- plain-JAX reference mirroring the PyTorch forward ----
    flat = jnp.transpose(z, (0, 2, 3, 1)).reshape(-1, code_dim)
    dist = (jnp.sum(flat * flat, axis=1, keepdims=True)
            - 2.0 * flat @ weight.T
            + jnp.sum(weight * weight, axis=1)[None, :])
    idx_ref = jnp.argmax(-dist, axis=1).astype(jnp.int32)

    idx_k = indices.reshape(-1)
    assert indices.shape == (b, h, w)
    assert bool(jnp.all((idx_k >= 0) & (idx_k < size)))

    # indices must match the reference except (possibly) on near-tie rows,
    # where the folded-score formulation may legitimately pick the other code
    d_sorted = jnp.sort(dist, axis=1)
    gap = d_sorted[:, 1] - d_sorted[:, 0]
    assert bool(jnp.all((idx_k == idx_ref) | (gap < 1e-4)))

    # whichever index was chosen, it must be (numerically) a nearest code
    chosen = jnp.take_along_axis(dist, idx_k[:, None], axis=1)[:, 0]
    assert bool(jnp.all(chosen <= d_sorted[:, 0] + 1e-4))

    # quantized pixels must equal the selected codebook rows
    q_rows = jnp.transpose(quantized, (0, 2, 3, 1)).reshape(-1, code_dim)
    assert bool(jnp.allclose(q_rows, weight[idx_k], atol=1e-5, rtol=1e-5))
    assert bool(jnp.allclose(ste, quantized, atol=1e-5))

    print("KERNEL_OK")
</pallas_src>

<mosaic_0001>
module attributes {stable_mosaic.version = 11 : i64} {
  func.func @_quantize_kernel(%arg0: i32, %arg1: i32, %arg2: memref<1x32x256xf32, #tpu.memory_space<vmem>>, %arg3: memref<16x32xf32, #tpu.memory_space<vmem>>, %arg4: memref<32x16xf32, #tpu.memory_space<vmem>>, %arg5: memref<16x1xf32, #tpu.memory_space<vmem>>, %arg6: memref<1x32x256xf32, #tpu.memory_space<vmem>>, %arg7: memref<1x1x256xi32, #tpu.memory_space<vmem>>) attributes {dimension_semantics = [#tpu.dimension_semantics<parallel>, #tpu.dimension_semantics<parallel>], iteration_bounds = array<i64: 2, 1>, scalar_prefetch = 0 : i64, scratch_operands = 0 : i64, tpu.core_type = #tpu.core_type<tc>, window_params = [{transform_indices = @transform_0, window_bounds = array<i64: 1, 32, 256>}, {pipeline_mode = #tpu.pipeline_mode<synchronous>, transform_indices = @transform_1, window_bounds = array<i64: 16, 32>}, {pipeline_mode = #tpu.pipeline_mode<synchronous>, transform_indices = @transform_2, window_bounds = array<i64: 32, 16>}, {pipeline_mode = #tpu.pipeline_mode<synchronous>, transform_indices = @transform_3, window_bounds = array<i64: 16, 1>}, {transform_indices = @transform_4, window_bounds = array<i64: 1, 32, 256>}, {transform_indices = @transform_5, window_bounds = array<i64: 1, 1, 256>}]} {
    %c0 = arith.constant 0 : index
    %c0_0 = arith.constant 0 : index
    %c0_1 = arith.constant 0 : index
    %0 = vector.load %arg2[%c0, %c0_0, %c0_1] : memref<1x32x256xf32, #tpu.memory_space<vmem>>, vector<1x32x256xf32>
    %1 = vector.shape_cast %0 : vector<1x32x256xf32> to vector<32x256xf32>
    %c0_2 = arith.constant 0 : index
    %c0_3 = arith.constant 0 : index
    %2 = vector.load %arg3[%c0_2, %c0_3] : memref<16x32xf32, #tpu.memory_space<vmem>>, vector<16x32xf32>
    %cst = arith.constant dense<0.000000e+00> : vector<16x256xf32>
    %3 = tpu.matmul %2, %1, %cst {dimension_numbers = #tpu.dot_dimension_numbers<[1], [0], [0], [1], [0, 0, 1, 1], [], []>} : vector<16x32xf32>, vector<32x256xf32>, vector<16x256xf32> -> vector<16x256xf32>
    %c0_4 = arith.constant 0 : index
    %c0_5 = arith.constant 0 : index
    %4 = vector.load %arg5[%c0_4, %c0_5] : memref<16x1xf32, #tpu.memory_space<vmem>>, vector<16x1xf32>
    %5 = vector.broadcast %4 : vector<16x1xf32> to vector<16x256xf32>
    %6 = arith.addf %3, %5 : vector<16x256xf32>
    %7 = tpu.iota {dimensions = array<i32: 0>} : vector<16x256xi32>
    %cst_6 = arith.constant dense<0xFF800000> : vector<256xf32>
    %8 = vector.multi_reduction <maximumf>, %6, %cst_6 [0] : vector<16x256xf32> to vector<256xf32>
    %9 = vector.shape_cast %8 : vector<256xf32> to vector<1x256xf32>
    %10 = vector.broadcast %9 : vector<1x256xf32> to vector<16x256xf32>
    %11 = arith.cmpf oeq, %6, %10 : vector<16x256xf32>
    %c16_i32 = arith.constant 16 : i32
    %12 = vector.broadcast %c16_i32 : i32 to vector<16x256xi32>
    %13 = arith.select %11, %7, %12 : vector<16x256xi1>, vector<16x256xi32>
    %cst_7 = arith.constant dense<2147483647> : vector<256xi32>
    %14 = vector.multi_reduction <minsi>, %13, %cst_7 [0] : vector<16x256xi32> to vector<256xi32>
    %15 = vector.shape_cast %14 : vector<256xi32> to vector<1x256xi32>
    %c0_8 = arith.constant 0 : index
    %c0_9 = arith.constant 0 : index
    %c0_10 = arith.constant 0 : index
    %16 = vector.load %arg7[%c0_8, %c0_9, %c0_10] : memref<1x1x256xi32, #tpu.memory_space<vmem>>, vector<1x1x256xi32>
    %17 = vector.shape_cast %16 : vector<1x1x256xi32> to vector<1x256xi32>
    %18 = vector.shape_cast %15 : vector<1x256xi32> to vector<1x1x256xi32>
    tpu.vector_store %arg7[%c0_8, %c0_9, %c0_10], %18 {strides = array<i32>} : memref<1x1x256xi32, #tpu.memory_space<vmem>>, vector<1x1x256xi32>,
    %19 = vector.broadcast %15 : vector<1x256xi32> to vector<16x256xi32>
    %20 = arith.cmpi eq, %7, %19 : vector<16x256xi32>
    %21 = arith.extui %20 : vector<16x256xi1> to vector<16x256xi32>
    %22 = arith.sitofp %21 : vector<16x256xi32> to vector<16x256xf32>
    %c0_11 = arith.constant 0 : index
    %c0_12 = arith.constant 0 : index
    %23 = vector.load %arg4[%c0_11, %c0_12] : memref<32x16xf32, #tpu.memory_space<vmem>>, vector<32x16xf32>
    %cst_13 = arith.constant dense<0.000000e+00> : vector<32x256xf32>
    %24 = tpu.matmul %23, %22, %cst_13 {dimension_numbers = #tpu.dot_dimension_numbers<[1], [0], [0], [1], [0, 0, 1, 1], [], []>} : vector<32x16xf32>, vector<16x256xf32>, vector<32x256xf32> -> vector<32x256xf32>
    %c0_14 = arith.constant 0 : index
    %c0_15 = arith.constant 0 : index
    %c0_16 = arith.constant 0 : index
    %25 = vector.load %arg6[%c0_14, %c0_15, %c0_16] : memref<1x32x256xf32, #tpu.memory_space<vmem>>, vector<1x32x256xf32>
    %26 = vector.shape_cast %25 : vector<1x32x256xf32> to vector<32x256xf32>
    %27 = vector.shape_cast %24 : vector<32x256xf32> to vector<1x32x256xf32>
    tpu.vector_store %arg6[%c0_14, %c0_15, %c0_16], %27 {strides = array<i32>} : memref<1x32x256xf32, #tpu.memory_space<vmem>>, vector<1x32x256xf32>,
    return
  }
  func.func @transform_0(%arg0: i32, %arg1: i32) -> (i32, i32, i32) {
    %c0_i32 = arith.constant 0 : i32
    %c0_i32_0 = arith.constant 0 : i32
    return %arg0, %c0_i32, %arg1 : i32, i32, i32
  }
  func.func @transform_1(%arg0: i32, %arg1: i32) -> (i32, i32) {
    %c0_i32 = arith.constant 0 : i32
    %c0_i32_0 = arith.constant 0 : i32
    %c0_i32_1 = arith.constant 0 : i32
    return %c0_i32, %c0_i32_0 : i32, i32
  }
  func.func @transform_2(%arg0: i32, %arg1: i32) -> (i32, i32) {
    %c0_i32 = arith.constant 0 : i32
    %c0_i32_0 = arith.constant 0 : i32
    %c0_i32_1 = arith.constant 0 : i32
    return %c0_i32, %c0_i32_0 : i32, i32
  }
  func.func @transform_3(%arg0: i32, %arg1: i32) -> (i32, i32) {
    %c0_i32 = arith.constant 0 : i32
    %c0_i32_0 = arith.constant 0 : i32
    %c0_i32_1 = arith.constant 0 : i32
    return %c0_i32, %c0_i32_0 : i32, i32
  }
  func.func @transform_4(%arg0: i32, %arg1: i32) -> (i32, i32, i32) {
    %c0_i32 = arith.constant 0 : i32
    %c0_i32_0 = arith.constant 0 : i32
    return %arg0, %c0_i32, %arg1 : i32, i32, i32
  }
  func.func @transform_5(%arg0: i32, %arg1: i32) -> (i32, i32, i32) {
    %c0_i32 = arith.constant 0 : i32
    %c0_i32_0 = arith.constant 0 : i32
    return %arg0, %c0_i32, %arg1 : i32, i32, i32
  }
}

</mosaic_0001>

<llo_original>
// kernel: squeeze.1
$region0: #{squeeze.1}
  %s0 = inlined_call_operand.vmem [shape: s32[2,256], index: 0, kind: input, shape index: {}]
  %s1 = inlined_call_operand.hbm [shape: s32[2,16,16], index: 1, kind: output, shape index: {}]
  $region1: #{squeeze.1} parent=0
    #allocation0 [shape = 'u8[16384]{0}', space=vmem, size = 0x4000, scoped, tag = 'operand span for operand 1']
    #allocation1 [shape = 's32[1]{0}', space=sflag, size = 0x4, scoped, tag = 'scoped memory for squeeze.1']
    #allocation2 [shape = 'u8[8192]{0}', space=vmem, size = 0x2000, scoped, tag = 'scoped mem for input reshape']
    %2 = vsyncpa [#allocation1], 0
    %s4 = ssub.s32 4, 1
    %s5 = scalar_lea.vmem %s0, 2
    %v6 = vld [vmem:[%s5] sm:%s4]
    %s7 = scalar_lea.vmem [#allocation2], 8
    %8 = vst [vmem:[%s7] sm:%s4] %v6
    %v9 = vld [vmem:[%s0] sm:%s4]
    %10 = vst [vmem:[#allocation2] sm:%s4] %v9
    %v11 = vld [vmem:[#allocation2] sm:$0x3]
    %vm12 = vcmask 130048
    %13 = vst.msk [vmem:[#allocation0] ss:$16 sm:$0x3] %vm12, %v11
    %s14 = scalar_lea.vmem [#allocation2], 8
    %v15 = vld [vmem:[%s14] sm:$0x3]
    %vm16 = vcmask 130048
    %s17 = scalar_lea.vmem [#allocation0], 8
    %18 = vst.msk [vmem:[%s17] ss:$16 sm:$0x3] %vm16, %v15
    %v19 = vld.sshfl [vmem:[#allocation2] sm:$0xff pattern:$0x99999180]
    %20 = vrot.lane.b32.xlu0 %v19, 112
    %v21 = vpop.permute.xlu0 %20
    %vm22 = vcmask 130048
    %s23 = scalar_lea.vmem [#allocation0], 1
    %24 = vst.msk [vmem:[%s23] ss:$8 sm:$0xf] %vm22, %v21
    %v25 = vld.sshfl [vmem:[#allocation2] sm:$0xff pattern:$0x99999180]
    %26 = vrot.lane.b32.xlu0 %v25, 96
    %v27 = vpop.permute.xlu0 %26
    %vm28 = vcmask 130048
    %s29 = scalar_lea.vmem [#allocation0], 2
    %30 = vst.msk [vmem:[%s29] ss:$8 sm:$0xf] %vm28, %v27
    %v31 = vld.sshfl [vmem:[#allocation2] sm:$0xff pattern:$0x99999180]
    %32 = vrot.lane.b32.xlu0 %v31, 80
    %v33 = vpop.permute.xlu0 %32
    %vm34 = vcmask 130048
    %s35 = scalar_lea.vmem [#allocation0], 3
    %36 = vst.msk [vmem:[%s35] ss:$8 sm:$0xf] %vm34, %v33
    %v37 = vld.sshfl [vmem:[#allocation2] sm:$0xff pattern:$0x99999180]
    %38 = vrot.lane.b32.xlu0 %v37, 64
    %v39 = vpop.permute.xlu0 %38
    %vm40 = vcmask 130048
    %s41 = scalar_lea.vmem [#allocation0], 4
    %42 = vst.msk [vmem:[%s41] ss:$8 sm:$0xf] %vm40, %v39
    %v43 = vld.sshfl [vmem:[#allocation2] sm:$0xff pattern:$0x99999180]
    %44 = vrot.lane.b32.xlu0 %v43, 48
    %v45 = vpop.permute.xlu0 %44
    %vm46 = vcmask 130048
    %s47 = scalar_lea.vmem [#allocation0], 5
    %48 = vst.msk [vmem:[%s47] ss:$8 sm:$0xf] %vm46, %v45
    %v49 = vld.sshfl [vmem:[#allocation2] sm:$0xff pattern:$0x99999180]
    %50 = vrot.lane.b32.xlu0 %v49, 32
    %v51 = vpop.permute.xlu0 %50
    %vm52 = vcmask 130048
    %s53 = scalar_lea.vmem [#allocation0], 6
    %54 = vst.msk [vmem:[%s53] ss:$8 sm:$0xf] %vm52, %v51
    %v55 = vld.sshfl [vmem:[#allocation2] sm:$0xff pattern:$0x99999180]
    %56 = vrot.lane.b32.xlu0 %v55, 16
    %v57 = vpop.permute.xlu0 %56
    %vm58 = vcmask 130048
    %s59 = scalar_lea.vmem [#allocation0], 7
    %60 = vst.msk [vmem:[%s59] ss:$8 sm:$0xf] %vm58, %v57
    %62 = vsyncadd [#allocation1], 0
    %s64 = sshll.u32 [#allocation0], 4
    %s65 = int_to_ptr.vmem [resolvable:$true] %s64
    %s66 = sshll.u32 %s1, 4
    %s67 = int_to_ptr.hbm [resolvable:$true] %s66
    %69 = dma.vmem_to_hbm [thread:$0]  %s65, 512, %s67, [#allocation1]
    %71 = dma.done [#allocation1], 512
    %72 = vsyncpa [#allocation1], 1

// kernel: quantize_forward.1
$region0: #{quantize_forward.1}
  #allocation0 [shape = 'u32[]', space=smem, size = 0x4, offset = 0x4, fixed_abs, tag = 'smem constant byte address 0x4 - core index']
  #allocation1 [shape = 'u32[72,128]{1,0:T(1,128)}', space=vmem, size = 0x9000, scoped, tag = 'internal scratch']
  %s0 = inlined_call_operand.vmem [shape: f32[2,32,256], index: 0, kind: input, shape index: {}]
  %s1 = inlined_call_operand.vmem [shape: f32[16,32], index: 1, kind: input, shape index: {}]
  %s2 = inlined_call_operand.vmem [shape: f32[32,16], index: 2, kind: input, shape index: {}]
  %s3 = inlined_call_operand.vmem [shape: f32[16,1], index: 3, kind: input, shape index: {}]
  %s4 = inlined_call_operand.vmem [shape: f32[2,32,256], index: 4, kind: output, shape index: {0}]
  %s5 = inlined_call_operand.vmem [shape: s32[2,1,256], index: 5, kind: output, shape index: {1}]
  %6 = xla_tuple %s4, %s5
  %s7 = sld [smem:[#allocation0]]
  $region57: #{quantize_forward.1} parent=0
    _
  %s9 = ssub.s32 1, %s7
  %s10 = scalar_select 0, %s9, %s7
  loop: start=0, step=1, limit=4
  $region2: #{quantize_forward.1} parent=0 // loop_pre_header
    _
  $region3: #{quantize_forward.1} parent=0 // loop_header
    %s12 = sphi 0, %s16
    %p13 = scmp.ge.s32.totalorder %s12, 4
    %s19 = sphi 0, %s31
    %s20 = sphi 0, %s27
    %s21 = sphi 0, %s19
    %s22 = sphi 0, %s20
    %s23 = sphi 0, %s21
    %s24 = sphi 0, %s22
    %s36 = sphi 0, %s38
    %s39 = sphi 0, %s36
    %s40 = sphi 0, %s39
    %s56 = sphi 0, %s40
    %s60 = sphi 0, %s60
    %s62 = sphi 0, %s60
    %s63 = sphi 0, %s62
    %s77 = sphi 0, %s63
    %s81 = sphi 0, %s81
    %s83 = sphi 0, %s81
    %s84 = sphi 0, %s83
    %s98 = sphi 0, %s84
    %s102 = sphi 0, %s102
    %s104 = sphi 0, %s102
    %s105 = sphi 0, %s104
    %s119 = sphi 0, %s105
    %s127 = sphi 0, %s129
    %s130 = sphi 0, %s127
    %s131 = sphi 0, %s130
    %s147 = sphi 0, %s131
    %s155 = sphi 0, %s157
    %s158 = sphi 0, %s155
    %s159 = sphi 0, %s158
    %s175 = sphi 0, %s159
  $region4: #{quantize_forward.1} parent=0 // loop_header_branch
    %15 = sbr.rel (%p13) target = $region8
  $region5: #{quantize_forward.1} parent=0 // loop_body
    %s17 = ssub.s32 %s12, 1
    %s18 = ssub.s32 %s12, 2
    %s25 = sadd.s32 1, %s20
    %p26 = scmp.ge.s32.totalorder %s25, 1
    %s27 = scalar_select %p26, 0, %s25
    %s28 = sadd.s32 1, %s19
    %s29 = scalar_select %p26, %s28, %s19
    %p30 = scmp.ge.s32.totalorder %s29, 2
    %s31 = scalar_select %p30, 0, %s29
    %s32 = ssub.s32 %s19, %s31
    %s33 = ssub.s32 %s20, %s27
    %s34 = sor.u32 %s32, %s33
    %p35 = scmp.eq.s32.totalorder %s34, 0
    %s37 = sadd.s32 %s36, 1
    %s38 = scalar_select %p35, %s36, %s37
    %p41 = pneg %p35
    %p42 = scmp.eq.s32.totalorder %s12, 1
    %p43 = por %p41, %p42
    %p44 = scmp.ne.s32.totalorder %s36, %s39
    %p45 = scmp.eq.s32.totalorder %s12, 0
    %p46 = por %p44, %p45
    %p47 = scmp.ne.s32.totalorder %s36, %s39
    %p48 = scmp.eq.s32.totalorder %s17, 1
    %p49 = por %p47, %p48
    %p50 = scmp.ne.s32.totalorder %s39, %s40
    %p51 = scmp.eq.s32.totalorder %s17, 0
    %p52 = por %p50, %p51
    %p53 = scmp.ne.s32.totalorder %s39, %s40
    %p54 = scmp.eq.s32.totalorder %s18, 1
    %p55 = por %p53, %p54
    %p57 = scmp.ne.s32.totalorder %s40, %s56
    %p58 = scmp.eq.s32.totalorder %s18, 0
    %p59 = por %p57, %p58
    %s61 = sadd.s32 %s60, 1
    %p64 = scmp.eq.s32.totalorder %s12, 1
    %p65 = scmp.ne.s32.totalorder %s60, %s62
    %p66 = scmp.eq.s32.totalorder %s12, 0
    %p67 = por %p65, %p66
    %p68 = scmp.ne.s32.totalorder %s60, %s62
    %p69 = scmp.eq.s32.totalorder %s17, 1
    %p70 = por %p68, %p69
    %p71 = scmp.ne.s32.totalorder %s62, %s63
    %p72 = scmp.eq.s32.totalorder %s17, 0
    %p73 = por %p71, %p72
    %p74 = scmp.ne.s32.totalorder %s62, %s63
    %p75 = scmp.eq.s32.totalorder %s18, 1
    %p76 = por %p74, %p75
    %p78 = scmp.ne.s32.totalorder %s63, %s77
    %p79 = scmp.eq.s32.totalorder %s18, 0
    %p80 = por %p78, %p79
    %s82 = sadd.s32 %s81, 1
    %p85 = scmp.eq.s32.totalorder %s12, 1
    %p86 = scmp.ne.s32.totalorder %s81, %s83
    %p87 = scmp.eq.s32.totalorder %s12, 0
    %p88 = por %p86, %p87
    %p89 = scmp.ne.s32.totalorder %s81, %s83
    %p90 = scmp.eq.s32.totalorder %s17, 1
    %p91 = por %p89, %p90
    %p92 = scmp.ne.s32.totalorder %s83, %s84
    %p93 = scmp.eq.s32.totalorder %s17, 0
    %p94 = por %p92, %p93
    %p95 = scmp.ne.s32.totalorder %s83, %s84
    %p96 = scmp.eq.s32.totalorder %s18, 1
    %p97 = por %p95, %p96
    %p99 = scmp.ne.s32.totalorder %s84, %s98
    %p100 = scmp.eq.s32.totalorder %s18, 0
    %p101 = por %p99, %p100
    %s103 = sadd.s32 %s102, 1
    %p106 = scmp.eq.s32.totalorder %s12, 1
    %p107 = scmp.ne.s32.totalorder %s102, %s104
    %p108 = scmp.eq.s32.totalorder %s12, 0
    %p109 = por %p107, %p108
    %p110 = scmp.ne.s32.totalorder %s102, %s104
    %p111 = scmp.eq.s32.totalorder %s17, 1
    %p112 = por %p110, %p111
    %p113 = scmp.ne.s32.totalorder %s104, %s105
    %p114 = scmp.eq.s32.totalorder %s17, 0
    %p115 = por %p113, %p114
    %p116 = scmp.ne.s32.totalorder %s104, %s105
    %p117 = scmp.eq.s32.totalorder %s18, 1
    %p118 = por %p116, %p117
    %p120 = scmp.ne.s32.totalorder %s105, %s119
    %p121 = scmp.eq.s32.totalorder %s18, 0
    %p122 = por %p120, %p121
    %s123 = ssub.s32 %s19, %s31
    %s124 = ssub.s32 %s20, %s27
    %s125 = sor.u32 %s123, %s124
    %p126 = scmp.eq.s32.totalorder %s125, 0
    %s128 = sadd.s32 %s127, 1
    %s129 = scalar_select %p126, %s127, %s128
    %p132 = pneg %p126
    %p133 = scmp.eq.s32.totalorder %s12, 1
    %p134 = por %p132, %p133
    %p135 = scmp.ne.s32.totalorder %s127, %s130
    %p136 = scmp.eq.s32.totalorder %s12, 0
    %p137 = por %p135, %p136
    %p138 = scmp.ne.s32.totalorder %s127, %s130
    %p139 = scmp.eq.s32.totalorder %s17, 1
    %p140 = por %p138, %p139
    %p141 = scmp.ne.s32.totalorder %s130, %s131
    %p142 = scmp.eq.s32.totalorder %s17, 0
    %p143 = por %p141, %p142
    %p144 = scmp.ne.s32.totalorder %s130, %s131
    %p145 = scmp.eq.s32.totalorder %s18, 1
    %p146 = por %p144, %p145
    %p148 = scmp.ne.s32.totalorder %s131, %s147
    %p149 = scmp.eq.s32.totalorder %s18, 0
    %p150 = por %p148, %p149
    %s151 = ssub.s32 %s19, %s31
    %s152 = ssub.s32 %s20, %s27
    %s153 = sor.u32 %s151, %s152
    %p154 = scmp.eq.s32.totalorder %s153, 0
    %s156 = sadd.s32 %s155, 1
    %s157 = scalar_select %p154, %s155, %s156
    %p160 = pneg %p154
    %p161 = scmp.eq.s32.totalorder %s12, 1
    %p162 = por %p160, %p161
    %p163 = scmp.ne.s32.totalorder %s155, %s158
    %p164 = scmp.eq.s32.totalorder %s12, 0
    %p165 = por %p163, %p164
    %p166 = scmp.ne.s32.totalorder %s155, %s158
    %p167 = scmp.eq.s32.totalorder %s17, 1
    %p168 = por %p166, %p167
    %p169 = scmp.ne.s32.totalorder %s158, %s159
    %p170 = scmp.eq.s32.totalorder %s17, 0
    %p171 = por %p169, %p170
    %p172 = scmp.ne.s32.totalorder %s158, %s159
    %p173 = scmp.eq.s32.totalorder %s18, 1
    %p174 = por %p172, %p173
    %p176 = scmp.ne.s32.totalorder %s159, %s175
    %p177 = scmp.eq.s32.totalorder %s18, 0
    %p178 = por %p176, %p177
    %p179 = scmp.le.s32.totalorder 1, %s12
    %p180 = scmp.lt.s32.totalorder %s12, 3
    %p181 = pnand %p179, %p180
    %p182 = pneg %p181
    // Predicated region
    $region9: #{quantize_forward.1} parent=5 // pred_check
      _
    $region10: #{quantize_forward.1} parent=5 // pred_check_branch
      %184 = sbr.rel (%p181) target = $region12
    $region11: #{quantize_forward.1} parent=5 // pred_region
      %s185 = ssub.s32 %s12, 1
      // Predicated region
      $region13: #{quantize_forward.1} parent=11 // pred_check
        %p186 = pneg %p73
      $region14: #{quantize_forward.1} parent=11 // pred_check_branch
        %188 = sbr.rel (%p186) target = $region16
      $region15: #{quantize_forward.1} parent=11 // pred_region
        _
      $region16: #{quantize_forward.1} parent=11 // pred_fallthru
        _
      // Predicated region
      $region17: #{quantize_forward.1} parent=11 // pred_check
        %p189 = pneg %p94
      $region18: #{quantize_forward.1} parent=11 // pred_check_branch
        %191 = sbr.rel (%p189) target = $region20
      $region19: #{quantize_forward.1} parent=11 // pred_region
        _
      $region20: #{quantize_forward.1} parent=11 // pred_fallthru
        _
      // Predicated region
      $region21: #{quantize_forward.1} parent=11 // pred_check
        %p192 = pneg %p115
      $region22: #{quantize_forward.1} parent=11 // pred_check_branch
        %194 = sbr.rel (%p192) target = $region24
      $region23: #{quantize_forward.1} parent=11 // pred_region
        _
      $region24: #{quantize_forward.1} parent=11 // pred_fallthru
        _
    $region12: #{quantize_forward.1} parent=5 // pred_fallthru
      _
    %p195 = scmp.lt.s32.totalorder %s12, 2
    // Predicated region
    $region25: #{quantize_forward.1} parent=5 // pred_check
      %p196 = pneg %p195
    $region26: #{quantize_forward.1} parent=5 // pred_check_branch
      %198 = sbr.rel (%p196) target = $region28
    $region27: #{quantize_forward.1} parent=5 // pred_region
      // Predicated region
      $region29: #{quantize_forward.1} parent=27 // pred_check
        %p199 = pneg %p46
      $region30: #{quantize_forward.1} parent=27 // pred_check_branch
        %201 = sbr.rel (%p199) target = $region32
      $region31: #{quantize_forward.1} parent=27 // pred_region
        %s202 = smul.u32 2, %s20
        %p203 = scmp.lt.s32.totalorder %s19, 1
        %s204 = scalar_select %p203, %s19, 1
        %p205 = scmp.lt.s32.totalorder %s202, 1
        %s206 = scalar_select %p205, %s202, 1
        %s207 = smul.addr %s204, 8
        %s208 = sadd.s32 %s206, %s207
        %s209 = smul.addr %s208, 8
        %s210 = scalar_lea.vmem %s0, %s209
        %s211 = smul.u32 2, %s20
      $region32: #{quantize_forward.1} parent=27 // pred_fallthru
        _
    $region28: #{quantize_forward.1} parent=5 // pred_fallthru
      _
    %p212 = scmp.le.s32.totalorder 1, %s12
    %p213 = scmp.lt.s32.totalorder %s12, 3
    %p214 = pnand %p212, %p213
    %p215 = pneg %p214
    // Predicated region
    $region33: #{quantize_forward.1} parent=5 // pred_check
      _
    $region34: #{quantize_forward.1} parent=5 // pred_check_branch
      %217 = sbr.rel (%p214) target = $region36
    $region35: #{quantize_forward.1} parent=5 // pred_region
      %s218 = ssub.s32 %s12, 1
      %s219 = smul.u32 2, %s22
      %p220 = scmp.lt.s32.totalorder %s21, 1
      %s221 = scalar_select %p220, %s21, 1
      %p222 = scmp.lt.s32.totalorder %s219, 1
      %s223 = scalar_select %p222, %s219, 1
      %s224 = smul.addr %s221, 8
      %s225 = sadd.s32 %s223, %s224
      %s226 = smul.addr %s225, 8
      %s227 = scalar_lea.vmem %s0, %s226
      %p228 = pneg %p52
      %p229 = pneg %p49
      %p230 = pneg %p73
      %p231 = pneg %p70
      %p232 = pneg %p94
      %p233 = pneg %p91
      %p234 = pneg %p115
      %p235 = pneg %p112
      %p236 = pneg %p143
      %p237 = pneg %p140
      %s238 = smul.u32 2, %s22
      %p239 = scmp.lt.s32.totalorder %s21, 1
      %s240 = scalar_select %p239, %s21, 1
      %p241 = scmp.lt.s32.totalorder %s238, 1
      %s242 = scalar_select %p241, %s238, 1
      %s243 = smul.addr %s240, 8
      %s244 = sadd.s32 %s242, %s243
      %s245 = smul.addr %s244, 8
      %s246 = scalar_lea.vmem %s4, %s245
      %p247 = pneg %p171
      %p248 = pneg %p168
      %s249 = smul.u32 2, %s22
      %p250 = scmp.lt.s32.totalorder %s21, 1
      %s251 = scalar_select %p250, %s21, 1
      %p252 = scmp.lt.s32.totalorder %s249, 1
      %s253 = scalar_select %p252, %s249, 1
      %s254 = smul.addr %s251, 2
      %s255 = sadd.s32 %s253, %s254
      %s256 = scalar_lea.vmem %s5, %s255
      %s257 = smul.u32 2, %s22
      %p258 = scmp.lt.s32.totalorder %s21, 1
      %s259 = scalar_select %p258, %s21, 1
      %p260 = scmp.lt.s32.totalorder %s257, 1
      %s261 = scalar_select %p260, %s257, 1
      %s262 = smul.addr %s259, 8
      %s263 = sadd.s32 %s261, %s262
      %s264 = smul.addr %s263, 8
      %s265 = scalar_lea.vmem %s0, %s264
      %s266 = smul.u32 2, %s22
      %s267 = smul.u32 2, %s22
      %p268 = scmp.lt.s32.totalorder %s21, 1
      %s269 = scalar_select %p268, %s21, 1
      %p270 = scmp.lt.s32.totalorder %s267, 1
      %s271 = scalar_select %p270, %s267, 1
      %s272 = smul.addr %s269, 8
      %s273 = sadd.s32 %s271, %s272
      %s274 = smul.addr %s273, 8
      %s275 = scalar_lea.vmem %s4, %s274
      %s276 = smul.u32 2, %s22
      %s277 = smul.u32 2, %s22
      %p278 = scmp.lt.s32.totalorder %s21, 1
      %s279 = scalar_select %p278, %s21, 1
      %p280 = scmp.lt.s32.totalorder %s277, 1
      %s281 = scalar_select %p280, %s277, 1
      %s282 = smul.addr %s279, 2
      %s283 = sadd.s32 %s281, %s282
      %s284 = scalar_lea.vmem %s5, %s283
      %s285 = smul.u32 2, %s22
      %v286 = vld [vmem:[%s265] sm:$0xff]
      %v287 = vld [vmem:[%s265 + $0x8] sm:$0xff]
      %v288 = vld [vmem:[%s265 + $0x10] sm:$0xff]
      %v289 = vld [vmem:[%s265 + $0x18] sm:$0xff]
      %v290 = vld [vmem:[%s265 + $0x20] sm:$0xff]
      %v291 = vld [vmem:[%s265 + $0x28] sm:$0xff]
      %v292 = vld [vmem:[%s265 + $0x30] sm:$0xff]
      %v293 = vld [vmem:[%s265 + $0x38] sm:$0xff]
      %v294 = vld [vmem:[%s1] sm:$0xff]
      %v295 = vld [vmem:[%s1 + $0x8] sm:$0xff]
      %v296 = vld [vmem:[%s3] sm:$0xff]
      %v297 = vld [vmem:[%s3 + $0x8] sm:$0xff]
      %299 = vset.pattern.permute.xlu0 0
      %300 = vperm.xlu0 %299, %v296
      %v301 = vpop.permute.xlu0 %300
      %304 = vset.pattern.permute.xlu0 0
      %305 = vperm.xlu0 %304, %v297
      %v306 = vpop.permute.xlu0 %305
      %vm308 = vcmask 261120
      %v310 = vsel %vm308, %v294, 0
      %v313 = vsel %vm308, %v295, 0
      %315 = vmatpush.msra.mxu0 0.0
      %316 = vmatpush.msra.mxu0 0.0
      %317 = vmatpush.msra.mxu0 0.0
      %318 = vmatpush.msra.mxu0 0.0
      %319 = vmatpush.msra.mxu0 0.0
      %320 = vmatpush.msra.mxu0 0.0
      %321 = vmatpush.msra.mxu0 0.0
      %322 = vmatpush.msra.mxu0 0.0
      %323 = vmatpush.msra.mxu0 0.0
      %324 = vmatpush.msra.mxu0 0.0
      %325 = vmatpush.msra.mxu0 0.0
      %326 = vmatpush.msra.mxu0 0.0
      %327 = vmatpush.msra.mxu0 %v292
      %328 = vmatpush.msra.mxu0 %v290
      %329 = vmatpush.msra.mxu0 %v288
      %330 = vmatpush.msra.mxu0 %v286
      %331 = vmatmul.f32.gmra.mxu0 %v310
      %v332 = vpop.f32.mrf.mxu0
      %v333 = vadd.f32 %v301, %v332
      %334 = vmatmul.f32.gmra.mxu0 %v313
      %v335 = vpop.f32.mrf.mxu0
      %v336 = vadd.f32 %v306, %v335
      %337 = vdwg.mxu0
      %338 = vmatpush.msra.mxu0 0.0
      %339 = vmatpush.msra.mxu0 0.0
      %340 = vmatpush.msra.mxu0 0.0
      %341 = vmatpush.msra.mxu0 0.0
      %342 = vmatpush.msra.mxu0 0.0
      %343 = vmatpush.msra.mxu0 0.0
      %344 = vmatpush.msra.mxu0 0.0
      %345 = vmatpush.msra.mxu0 0.0
      %346 = vmatpush.msra.mxu0 0.0
      %347 = vmatpush.msra.mxu0 0.0
      %348 = vmatpush.msra.mxu0 0.0
      %349 = vmatpush.msra.mxu0 0.0
      %350 = vmatpush.msra.mxu0 %v293
      %351 = vmatpush.msra.mxu0 %v291
      %352 = vmatpush.msra.mxu0 %v289
      %353 = vmatpush.msra.mxu0 %v287
      %354 = vmatmul.f32.gmra.mxu0 %v310
      %v355 = vpop.f32.mrf.mxu0
      %v356 = vadd.f32 %v301, %v355
      %357 = vmatmul.f32.gmra.mxu0 %v313
      %v358 = vpop.f32.mrf.mxu0
      %v359 = vadd.f32 %v306, %v358
      %360 = vdwg.mxu0
      %v361 = vlaneseq
      %v362 = vshrl.u32 %v361, 7
      %v363 = vadd.s32 %v362, 8
      %v364 = vmax.f32 %v333, %v336
      %v365 = vrot.slane %v364, 4
      %v366 = vmax.f32 %v364, %v365
      %v367 = vrot.slane %v366, 2
      %v368 = vmax.f32 %v366, %v367
      %v369 = vrot.slane %v368, 1
      %v370 = vmax.f32 %v368, %v369
      %v371 = vmax.f32 %v356, %v359
      %v372 = vrot.slane %v371, 4
      %v373 = vmax.f32 %v371, %v372
      %v374 = vrot.slane %v373, 2
      %v375 = vmax.f32 %v373, %v374
      %v376 = vrot.slane %v375, 1
      %v377 = vmax.f32 %v375, %v376
      %vm378 = vcmp.eq.f32.partialorder %v333, %v370
      %vm379 = vcmp.eq.f32.partialorder %v356, %v377
      %vm380 = vcmp.eq.f32.partialorder %v336, %v370
      %vm381 = vcmp.eq.f32.partialorder %v359, %v377
      %v382 = vsel %vm378, %v362, 16
      %v383 = vsel %vm379, %v362, 16
      %v384 = vsel %vm380, %v363, 16
      %v385 = vsel %vm381, %v363, 16
      %vm386 = vcmp.lt.s32.totalorder %v382, %v384
      %v387 = vsel %vm386, %v382, %v384
      %v388 = vrot.slane %v387, 4
      %vm389 = vcmp.lt.s32.totalorder %v387, %v388
      %v390 = vsel %vm389, %v387, %v388
      %v391 = vrot.slane %v390, 2
      %vm392 = vcmp.lt.s32.totalorder %v390, %v391
      %v393 = vsel %vm392, %v390, %v391
      %v394 = vrot.slane %v393, 1
      %vm395 = vcmp.lt.s32.totalorder %v393, %v394
      %v396 = vsel %vm395, %v393, %v394
      %vm397 = vcmp.lt.s32.totalorder %v383, %v385
      %v398 = vsel %vm397, %v383, %v385
      %v399 = vrot.slane %v398, 4
      %vm400 = vcmp.lt.s32.totalorder %v398, %v399
      %v401 = vsel %vm400, %v398, %v399
      %v402 = vrot.slane %v401, 2
      %vm403 = vcmp.lt.s32.totalorder %v401, %v402
      %v404 = vsel %vm403, %v401, %v402
      %v405 = vrot.slane %v404, 1
      %vm406 = vcmp.lt.s32.totalorder %v404, %v405
      %v407 = vsel %vm406, %v404, %v405
      %v408 = vrot.slane %v407, 7
      %vm409 = vcmask 1040384
      %v410 = vsel %vm409, %v396, %v408
      %v411 = vlaneseq
      %vm412 = vcmp.ge.s32.totalorder %v411, 0
      %vm413 = vcmp.lt.s32.totalorder %v411, 256
      %vm414 = vmand %vm412, %vm413
      %415 = vst.msk [vmem:[%s284] sm:$0x3] %vm414, %v410
      %vm416 = vcmp.eq.s32.totalorder %v362, %v396
      %vm417 = vcmp.eq.s32.totalorder %v362, %v407
      %vm418 = vcmp.eq.s32.totalorder %v363, %v396
      %vm419 = vcmp.eq.s32.totalorder %v363, %v407
      %v420 = vsel %vm416, 1, 0
      %v421 = vsel %vm417, 1, 0
      %v422 = vsel %vm418, 1, 0
      %v423 = vsel %vm419, 1, 0
      %v424 = vcvt.s32.f32 %v420
      %v425 = vcvt.s32.f32 %v421
      %v426 = vcvt.s32.f32 %v422
      %v427 = vcvt.s32.f32 %v423
      %v428 = vld [vmem:[%s2] sm:$0xff]
      %v429 = vld [vmem:[%s2 + $0x8] sm:$0xff]
      %v430 = vld [vmem:[%s2 + $0x10] sm:$0xff]
      %v431 = vld [vmem:[%s2 + $0x18] sm:$0xff]
      %vm432 = vcmask 130048
      %v434 = vsel %vm432, %v428, 0
      %v437 = vsel %vm432, %v429, 0
      %v440 = vsel %vm432, %v430, 0
      %v443 = vsel %vm432, %v431, 0
      %445 = vmatpush.msra.mxu0 0.0
      %446 = vmatpush.msra.mxu0 0.0
      %447 = vmatpush.msra.mxu0 0.0
      %448 = vmatpush.msra.mxu0 0.0
      %449 = vmatpush.msra.mxu0 0.0
      %450 = vmatpush.msra.mxu0 0.0
      %451 = vmatpush.msra.mxu0 0.0
      %452 = vmatpush.msra.mxu0 0.0
      %453 = vmatpush.msra.mxu0 0.0
      %454 = vmatpush.msra.mxu0 0.0
      %455 = vmatpush.msra.mxu0 0.0
      %456 = vmatpush.msra.mxu0 0.0
      %457 = vmatpush.msra.mxu0 0.0
      %458 = vmatpush.msra.mxu0 0.0
      %459 = vmatpush.msra.mxu0 %v426
      %460 = vmatpush.msra.mxu0 %v424
      %461 = vmatmul.f32.gmra.mxu0 %v434
      %v462 = vpop.f32.mrf.mxu0
      %v463 = vadd.f32 0.0, %v462
      %464 = vmatmul.f32.gmra.mxu0 %v437
      %v465 = vpop.f32.mrf.mxu0
      %v466 = vadd.f32 0.0, %v465
      %467 = vmatmul.f32.gmra.mxu0 %v440
      %v468 = vpop.f32.mrf.mxu0
      %v469 = vadd.f32 0.0, %v468
      %470 = vmatmul.f32.gmra.mxu0 %v443
      %v471 = vpop.f32.mrf.mxu0
      %v472 = vadd.f32 0.0, %v471
      %473 = vdwg.mxu0
      %474 = vmatpush.msra.mxu0 0.0
      %475 = vmatpush.msra.mxu0 0.0
      %476 = vmatpush.msra.mxu0 0.0
      %477 = vmatpush.msra.mxu0 0.0
      %478 = vmatpush.msra.mxu0 0.0
      %479 = vmatpush.msra.mxu0 0.0
      %480 = vmatpush.msra.mxu0 0.0
      %481 = vmatpush.msra.mxu0 0.0
      %482 = vmatpush.msra.mxu0 0.0
      %483 = vmatpush.msra.mxu0 0.0
      %484 = vmatpush.msra.mxu0 0.0
      %485 = vmatpush.msra.mxu0 0.0
      %486 = vmatpush.msra.mxu0 0.0
      %487 = vmatpush.msra.mxu0 0.0
      %488 = vmatpush.msra.mxu0 %v427
      %489 = vmatpush.msra.mxu0 %v425
      %490 = vmatmul.f32.gmra.mxu0 %v434
      %v491 = vpop.f32.mrf.mxu0
      %v492 = vadd.f32 0.0, %v491
      %493 = vmatmul.f32.gmra.mxu0 %v437
      %v494 = vpop.f32.mrf.mxu0
      %v495 = vadd.f32 0.0, %v494
      %496 = vmatmul.f32.gmra.mxu0 %v440
      %v497 = vpop.f32.mrf.mxu0
      %v498 = vadd.f32 0.0, %v497
      %499 = vmatmul.f32.gmra.mxu0 %v443
      %v500 = vpop.f32.mrf.mxu0
      %v501 = vadd.f32 0.0, %v500
      %502 = vdwg.mxu0
      %503 = vst [vmem:[%s275] sm:$0xff] %v463
      %504 = vst [vmem:[%s275 + $0x8] sm:$0xff] %v492
      %505 = vst [vmem:[%s275 + $0x10] sm:$0xff] %v466
      %506 = vst [vmem:[%s275 + $0x18] sm:$0xff] %v495
      %507 = vst [vmem:[%s275 + $0x20] sm:$0xff] %v469
      %508 = vst [vmem:[%s275 + $0x28] sm:$0xff] %v498
      %509 = vst [vmem:[%s275 + $0x30] sm:$0xff] %v472
      %510 = vst [vmem:[%s275 + $0x38] sm:$0xff] %v501
      %s511 = smul.u32 2, %s22
      %p512 = scmp.lt.s32.totalorder %s21, 1
      %s513 = scalar_select %p512, %s21, 1
      %p514 = scmp.lt.s32.totalorder %s511, 1
      %s515 = scalar_select %p514, %s511, 1
      %s516 = smul.addr %s513, 8
      %s517 = sadd.s32 %s515, %s516
      %s518 = smul.addr %s517, 8
      %s519 = scalar_lea.vmem %s4, %s518
      %s520 = smul.u32 2, %s22
      %p521 = scmp.lt.s32.totalorder %s21, 1
      %s522 = scalar_select %p521, %s21, 1
      %p523 = scmp.lt.s32.totalorder %s520, 1
      %s524 = scalar_select %p523, %s520, 1
      %s525 = smul.addr %s522, 2
      %s526 = sadd.s32 %s524, %s525
      %s527 = scalar_lea.vmem %s5, %s526
      // Predicated region
      $region37: #{quantize_forward.1} parent=35 // pred_check
        %p528 = pneg %p140
      $region38: #{quantize_forward.1} parent=35 // pred_check_branch
        %530 = sbr.rel (%p528) target = $region40
      $region39: #{quantize_forward.1} parent=35 // pred_region
        %s531 = smul.u32 2, %s22
      $region40: #{quantize_forward.1} parent=35 // pred_fallthru
        _
      // Predicated region
      $region41: #{quantize_forward.1} parent=35 // pred_check
        %p532 = pneg %p168
      $region42: #{quantize_forward.1} parent=35 // pred_check_branch
        %534 = sbr.rel (%p532) target = $region44
      $region43: #{quantize_forward.1} parent=35 // pred_region
        %s535 = smul.u32 2, %s22
      $region44: #{quantize_forward.1} parent=35 // pred_fallthru
        _
    $region36: #{quantize_forward.1} parent=5 // pred_fallthru
      _
    %p536 = scmp.le.s32.totalorder 2, %s12
    // Predicated region
    $region45: #{quantize_forward.1} parent=5 // pred_check
      %p537 = pneg %p536
    $region46: #{quantize_forward.1} parent=5 // pred_check_branch
      %539 = sbr.rel (%p537) target = $region48
    $region47: #{quantize_forward.1} parent=5 // pred_region
      %s540 = ssub.s32 %s12, 2
      // Predicated region
      $region49: #{quantize_forward.1} parent=47 // pred_check
        %p541 = pneg %p146
      $region50: #{quantize_forward.1} parent=47 // pred_check_branch
        %543 = sbr.rel (%p541) target = $region52
      $region51: #{quantize_forward.1} parent=47 // pred_region
        %s544 = smul.u32 2, %s24
        %p545 = scmp.lt.s32.totalorder %s23, 1
        %s546 = scalar_select %p545, %s23, 1
        %p547 = scmp.lt.s32.totalorder %s544, 1
        %s548 = scalar_select %p547, %s544, 1
        %s549 = smul.addr %s546, 8
        %s550 = sadd.s32 %s548, %s549
        %s551 = smul.addr %s550, 8
        %s552 = scalar_lea.vmem %s4, %s551
      $region52: #{quantize_forward.1} parent=47 // pred_fallthru
        _
      // Predicated region
      $region53: #{quantize_forward.1} parent=47 // pred_check
        %p553 = pneg %p174
      $region54: #{quantize_forward.1} parent=47 // pred_check_branch
        %555 = sbr.rel (%p553) target = $region56
      $region55: #{quantize_forward.1} parent=47 // pred_region
        %s556 = smul.u32 2, %s24
        %p557 = scmp.lt.s32.totalorder %s23, 1
        %s558 = scalar_select %p557, %s23, 1
        %p559 = scmp.lt.s32.totalorder %s556, 1
        %s560 = scalar_select %p559, %s556, 1
        %s561 = smul.addr %s558, 2
        %s562 = sadd.s32 %s560, %s561
        %s563 = scalar_lea.vmem %s5, %s562
      $region56: #{quantize_forward.1} parent=47 // pred_fallthru
        _
    $region48: #{quantize_forward.1} parent=5 // pred_fallthru
      _
  $region6: #{quantize_forward.1} parent=0 // loop_footer
    %s16 = sadd.s32 1, %s12
  $region7: #{quantize_forward.1} parent=0 // loop_footer_branch
    %11 = sbr.rel target = $region3
  $region8: #{quantize_forward.1} parent=0 // loop_exit
    _

</llo_original>
